<compile_context>
chip_gen: v7x
topology: tpu7x:2x2x1
jax: 0.10.0
libtpu: 0.0.40
codegen_flags: <defaults>
</compile_context>

<pallas_src>
import functools
import math

import jax
import jax.numpy as jnp
from jax.experimental import pallas as pl
from jax.experimental.pallas import tpu as pltpu


def _gated_dp_kernel(key_ref, query_ref, wxp_ref, wyp_ref, wfp_ref,
                     bxp_ref, byp_ref, bfp_ref, out_ref, *, chunk, unroll):
    """One grid step over (brows, pack*d) lane-packed rows of key/query."""

    def body(c, carry):
        i = pl.multiple_of(c * chunk, chunk)
        k = key_ref[pl.ds(i, chunk), :]
        q = query_ref[pl.ds(i, chunk), :]
        # Fused per-row linearX / linearY via block-diagonal lane-packed weights.
        pk = jnp.dot(k, wxp_ref[...], preferred_element_type=jnp.float32) + bxp_ref[...]
        pq = jnp.dot(q, wyp_ref[...], preferred_element_type=jnp.float32) + byp_ref[...]
        gate = pk * pq
        # TODO(synk): dropout_ratio > 0 path (nn.Dropout) not implemented; module default is 0.
        logits = jnp.dot(gate.astype(wfp_ref.dtype), wfp_ref[...],
                         preferred_element_type=jnp.float32) + bfp_ref[...]
        out_ref[pl.ds(i, chunk), :] = jax.nn.sigmoid(logits).astype(out_ref.dtype)
        return carry

    n_chunks = key_ref.shape[0] // chunk
    jax.lax.fori_loop(0, n_chunks, body, 0, unroll=unroll)


def gated_dot_product(key, query, wx, bx, wy, by, w, b, *, vmem_block_bytes=1 << 20):
    """GatedDotProduct forward.

    key, query: (..., d_base); weights in PyTorch (out, in) layout, biases (out,).
    Returns sigmoid(((key @ Wx.T + bx) * (query @ Wy.T + by)) @ W.T + b), shape (..., 2).
    """
    assert key.shape == query.shape
    orig_shape = key.shape
    d = orig_shape[-1]
    n = math.prod(orig_shape[:-1])
    cdt = key.dtype
    itemsize = jnp.dtype(cdt).itemsize

    # Rows packed per 128-lane register row (d=8 -> 16 rows per lane-row).
    # Falls back to pack=1 (lane-sparse but still correct) if d doesn't divide 128.
    pack = 128 // d if (d <= 128 and 128 % d == 0) else 1
    lane = pack * d
    row_align = 8 * pack                       # packed sublane dim must be a multiple of 8

    def round_up(x, m):
        return ((x + m - 1) // m) * m

    # Rows per grid step: big blocks amortize the ~0.35us/step overhead; cap at
    # ~vmem_block_bytes per input block (keeps double-buffered inputs + small
    # intermediates well under v5e's 16 MiB scoped-VMEM default and scales with
    # d / dtype for v7x's 64 MiB VMEM); force >=2 steps for mid-size N so the
    # "parallel" grid axis can feed both v7x TensorCores.
    max_block_rows = max(row_align,
                         (vmem_block_bytes // (d * itemsize)) // row_align * row_align)
    n_pad = round_up(max(n, row_align), row_align)
    num_blocks = pl.cdiv(n_pad, max_block_rows)
    if num_blocks == 1 and n_pad >= 8192:
        num_blocks = 2
    block_rows = round_up(pl.cdiv(n_pad, num_blocks), row_align)
    n_pad = block_rows * num_blocks
    brows = block_rows // pack                 # packed rows per grid step

    # Zero wrapper-side data movement: the reshapes below are free (contiguous);
    # jnp.pad only copies when n is not already a block multiple.
    key2 = key.reshape(n, d)
    query2 = query.reshape(n, d)
    if n_pad != n:
        key2 = jnp.pad(key2, ((0, n_pad - n), (0, 0)))
        query2 = jnp.pad(query2, ((0, n_pad - n), (0, 0)))
    key_p = key2.reshape(n_pad // pack, lane)
    query_p = query2.reshape(n_pad // pack, lane)

    # Lane-packed block-diagonal weights (PyTorch (out,in) layout -> x @ W.T),
    # kept in the model dtype; bias broadcast rows stay f32 (added post-dot).
    eye = jnp.eye(pack, dtype=jnp.float32)
    wxp = jnp.kron(eye, wx.astype(jnp.float32).T).astype(cdt)     # (lane, lane)
    wyp = jnp.kron(eye, wy.astype(jnp.float32).T).astype(cdt)     # (lane, lane)
    wfp = jnp.kron(eye, w.astype(jnp.float32).T).astype(cdt)      # (lane, 2*pack)
    bxp = jnp.tile(bx.astype(jnp.float32), pack).reshape(1, lane)
    byp = jnp.tile(by.astype(jnp.float32), pack).reshape(1, lane)
    bfp = jnp.tile(b.astype(jnp.float32), pack).reshape(1, 2 * pack)

    # In-kernel sublane chunking keeps proj/gate intermediates small (<=64 KiB each).
    chunk = brows
    for c in (128, 64, 32, 16, 8):
        if brows % c == 0:
            chunk = c
            break
    n_chunks = brows // chunk

    cost = pl.CostEstimate(
        flops=int((n_pad // pack) * (4 * lane * lane + 4 * lane * pack + 3 * lane + 2 * pack)),
        transcendentals=int(2 * n_pad),
        bytes_accessed=int(n_pad * 2 * d * itemsize + n_pad * 2 * itemsize
                           + (2 * lane * lane + 2 * lane * pack) * itemsize
                           + (2 * lane + 2 * pack) * 4),
    )

    out_packed = pl.pallas_call(
        functools.partial(_gated_dp_kernel, chunk=chunk, unroll=n_chunks <= 8),
        out_shape=jax.ShapeDtypeStruct((n_pad // pack, 2 * pack), cdt),
        grid=(num_blocks,),
        in_specs=[
            pl.BlockSpec((brows, lane), lambda i: (i, 0)),      # key   (lane-packed)
            pl.BlockSpec((brows, lane), lambda i: (i, 0)),      # query (lane-packed)
            pl.BlockSpec((lane, lane), lambda i: (0, 0)),       # kron(I, Wx.T)
            pl.BlockSpec((lane, lane), lambda i: (0, 0)),       # kron(I, Wy.T)
            pl.BlockSpec((lane, 2 * pack), lambda i: (0, 0)),   # kron(I, W.T)
            pl.BlockSpec((1, lane), lambda i: (0, 0)),          # bx tiled
            pl.BlockSpec((1, lane), lambda i: (0, 0)),          # by tiled
            pl.BlockSpec((1, 2 * pack), lambda i: (0, 0)),      # b tiled
        ],
        out_specs=pl.BlockSpec((brows, 2 * pack), lambda i: (i, 0)),
        compiler_params=pltpu.CompilerParams(
            dimension_semantics=("parallel",)),
        cost_estimate=cost,
    )(key_p, query_p, wxp, wyp, wfp, bxp, byp, bfp)

    out = out_packed.reshape(n_pad, 2)         # free, contiguous reshape back to row-major
    if n_pad != n:
        out = out[:n]
    return out.reshape(orig_shape[:-1] + (2,))


def _init_linear(rng, in_f, out_f):
    """nn.Linear default init: U(-1/sqrt(in_f), 1/sqrt(in_f)); PyTorch (out, in) layout."""
    kw, kb = jax.random.split(rng)
    bound = 1.0 / math.sqrt(in_f)
    w = jax.random.uniform(kw, (out_f, in_f), jnp.float32, -bound, bound)
    b = jax.random.uniform(kb, (out_f,), jnp.float32, -bound, bound)
    return w, b


def _reference(key, query, wx, bx, wy, by, w, b):
    k = key @ wx.T + bx
    q = query @ wy.T + by
    gate = k * q
    return jax.nn.sigmoid(gate @ w.T + b)


if __name__ == "__main__":
    # Cfgs: HIDDEN_SIZE=32, MULTI_HEAD=4 -> d_base = 8
    HIDDEN_SIZE, MULTI_HEAD = 32, 4
    d_base = HIDDEN_SIZE // MULTI_HEAD
    batch, heads, seq = 2, MULTI_HEAD, 8       # key/query: (2, 4, 8, 8)

    root = jax.random.PRNGKey(0)
    k_key, k_query, k_lx, k_ly, k_lo = jax.random.split(root, 5)

    key_in = jax.random.normal(k_key, (batch, heads, seq, d_base), jnp.float32)
    query_in = jax.random.normal(k_query, (batch, heads, seq, d_base), jnp.float32)

    wx, bx = _init_linear(k_lx, d_base, d_base)   # linearX
    wy, by = _init_linear(k_ly, d_base, d_base)   # linearY
    w, b = _init_linear(k_lo, d_base, 2)          # linear -> 2 gates

    out = gated_dot_product(key_in, query_in, wx, bx, wy, by, w, b)
    out = jax.block_until_ready(out)

    ref = _reference(key_in, query_in, wx, bx, wy, by, w, b)
    assert out.shape == (batch, heads, seq, 2), out.shape
    assert jnp.allclose(out, ref, atol=1e-5, rtol=1e-5), "mismatch vs reference"

    print("KERNEL_OK")
</pallas_src>

<mosaic_0001>
module attributes {stable_mosaic.version = 11 : i64} {
  func.func @_gated_dp_kernel(%arg0: i32, %arg1: memref<8x128xf32, #tpu.memory_space<vmem>>, %arg2: memref<8x128xf32, #tpu.memory_space<vmem>>, %arg3: memref<128x128xf32, #tpu.memory_space<vmem>>, %arg4: memref<128x128xf32, #tpu.memory_space<vmem>>, %arg5: memref<128x32xf32, #tpu.memory_space<vmem>>, %arg6: memref<1x128xf32, #tpu.memory_space<vmem>>, %arg7: memref<1x128xf32, #tpu.memory_space<vmem>>, %arg8: memref<1x32xf32, #tpu.memory_space<vmem>>, %arg9: memref<8x32xf32, #tpu.memory_space<vmem>>) attributes {dimension_semantics = [#tpu.dimension_semantics<parallel>], iteration_bounds = array<i64: 1>, scalar_prefetch = 0 : i64, scratch_operands = 0 : i64, tpu.core_type = #tpu.core_type<tc>, window_params = [{transform_indices = @transform_0, window_bounds = array<i64: 8, 128>}, {transform_indices = @transform_1, window_bounds = array<i64: 8, 128>}, {pipeline_mode = #tpu.pipeline_mode<synchronous>, transform_indices = @transform_2, window_bounds = array<i64: 128, 128>}, {pipeline_mode = #tpu.pipeline_mode<synchronous>, transform_indices = @transform_3, window_bounds = array<i64: 128, 128>}, {pipeline_mode = #tpu.pipeline_mode<synchronous>, transform_indices = @transform_4, window_bounds = array<i64: 128, 32>}, {pipeline_mode = #tpu.pipeline_mode<synchronous>, transform_indices = @transform_5, window_bounds = array<i64: 1, 128>}, {pipeline_mode = #tpu.pipeline_mode<synchronous>, transform_indices = @transform_6, window_bounds = array<i64: 1, 128>}, {pipeline_mode = #tpu.pipeline_mode<synchronous>, transform_indices = @transform_7, window_bounds = array<i64: 1, 32>}, {transform_indices = @transform_8, window_bounds = array<i64: 8, 32>}]} {
    %c0_i32 = arith.constant 0 : i32
    %c8_i32 = arith.constant 8 : i32
    %0 = arith.muli %c0_i32, %c8_i32 : i32
    %1 = tpu.assume_multiple %0, 8 : i32
    %2 = arith.index_cast %1 : i32 to index
    %c0 = arith.constant 0 : index
    %3 = vector.load %arg1[%2, %c0] : memref<8x128xf32, #tpu.memory_space<vmem>>, vector<8x128xf32>
    %4 = arith.index_cast %1 : i32 to index
    %c0_0 = arith.constant 0 : index
    %5 = vector.load %arg2[%4, %c0_0] : memref<8x128xf32, #tpu.memory_space<vmem>>, vector<8x128xf32>
    %c0_1 = arith.constant 0 : index
    %c0_2 = arith.constant 0 : index
    %6 = vector.load %arg3[%c0_1, %c0_2] : memref<128x128xf32, #tpu.memory_space<vmem>>, vector<128x128xf32>
    %cst = arith.constant dense<0.000000e+00> : vector<8x128xf32>
    %7 = tpu.matmul %3, %6, %cst {dimension_numbers = #tpu.dot_dimension_numbers<[1], [0], [0], [1], [0, 0, 1, 1], [], []>} : vector<8x128xf32>, vector<128x128xf32>, vector<8x128xf32> -> vector<8x128xf32>
    %c0_3 = arith.constant 0 : index
    %c0_4 = arith.constant 0 : index
    %8 = vector.load %arg6[%c0_3, %c0_4] : memref<1x128xf32, #tpu.memory_space<vmem>>, vector<1x128xf32>
    %9 = vector.broadcast %8 : vector<1x128xf32> to vector<8x128xf32>
    %10 = arith.addf %7, %9 : vector<8x128xf32>
    %c0_5 = arith.constant 0 : index
    %c0_6 = arith.constant 0 : index
    %11 = vector.load %arg4[%c0_5, %c0_6] : memref<128x128xf32, #tpu.memory_space<vmem>>, vector<128x128xf32>
    %cst_7 = arith.constant dense<0.000000e+00> : vector<8x128xf32>
    %12 = tpu.matmul %5, %11, %cst_7 {dimension_numbers = #tpu.dot_dimension_numbers<[1], [0], [0], [1], [0, 0, 1, 1], [], []>} : vector<8x128xf32>, vector<128x128xf32>, vector<8x128xf32> -> vector<8x128xf32>
    %c0_8 = arith.constant 0 : index
    %c0_9 = arith.constant 0 : index
    %13 = vector.load %arg7[%c0_8, %c0_9] : memref<1x128xf32, #tpu.memory_space<vmem>>, vector<1x128xf32>
    %14 = vector.broadcast %13 : vector<1x128xf32> to vector<8x128xf32>
    %15 = arith.addf %12, %14 : vector<8x128xf32>
    %16 = arith.mulf %10, %15 : vector<8x128xf32>
    %c0_10 = arith.constant 0 : index
    %c0_11 = arith.constant 0 : index
    %17 = vector.load %arg5[%c0_10, %c0_11] : memref<128x32xf32, #tpu.memory_space<vmem>>, vector<128x32xf32>
    %cst_12 = arith.constant dense<0.000000e+00> : vector<8x32xf32>
    %18 = tpu.matmul %16, %17, %cst_12 {dimension_numbers = #tpu.dot_dimension_numbers<[1], [0], [0], [1], [0, 0, 1, 1], [], []>} : vector<8x128xf32>, vector<128x32xf32>, vector<8x32xf32> -> vector<8x32xf32>
    %c0_13 = arith.constant 0 : index
    %c0_14 = arith.constant 0 : index
    %19 = vector.load %arg8[%c0_13, %c0_14] : memref<1x32xf32, #tpu.memory_space<vmem>>, vector<1x32xf32>
    %20 = vector.broadcast %19 : vector<1x32xf32> to vector<8x32xf32>
    %21 = arith.addf %18, %20 : vector<8x32xf32>
    %22 = arith.negf %21 : vector<8x32xf32>
    %23 = math.exp %22 : vector<8x32xf32>
    %cst_15 = arith.constant 1.000000e+00 : f32
    %24 = vector.broadcast %cst_15 : f32 to vector<8x32xf32>
    %25 = arith.addf %24, %23 : vector<8x32xf32>
    %26 = arith.divf %24, %25 : vector<8x32xf32>
    %27 = arith.index_cast %1 : i32 to index
    %c0_16 = arith.constant 0 : index
    %28 = vector.load %arg9[%27, %c0_16] : memref<8x32xf32, #tpu.memory_space<vmem>>, vector<8x32xf32>
    tpu.vector_store %arg9[%27, %c0_16], %26 {strides = array<i32>} : memref<8x32xf32, #tpu.memory_space<vmem>>, vector<8x32xf32>,
    %c1_i32 = arith.constant 1 : i32
    return
  }
  func.func @transform_0(%arg0: i32) -> (i32, i32) {
    %c0_i32 = arith.constant 0 : i32
    %c0_i32_0 = arith.constant 0 : i32
    return %arg0, %c0_i32 : i32, i32
  }
  func.func @transform_1(%arg0: i32) -> (i32, i32) {
    %c0_i32 = arith.constant 0 : i32
    %c0_i32_0 = arith.constant 0 : i32
    return %arg0, %c0_i32 : i32, i32
  }
  func.func @transform_2(%arg0: i32) -> (i32, i32) {
    %c0_i32 = arith.constant 0 : i32
    %c0_i32_0 = arith.constant 0 : i32
    %c0_i32_1 = arith.constant 0 : i32
    return %c0_i32, %c0_i32_0 : i32, i32
  }
  func.func @transform_3(%arg0: i32) -> (i32, i32) {
    %c0_i32 = arith.constant 0 : i32
    %c0_i32_0 = arith.constant 0 : i32
    %c0_i32_1 = arith.constant 0 : i32
    return %c0_i32, %c0_i32_0 : i32, i32
  }
  func.func @transform_4(%arg0: i32) -> (i32, i32) {
    %c0_i32 = arith.constant 0 : i32
    %c0_i32_0 = arith.constant 0 : i32
    %c0_i32_1 = arith.constant 0 : i32
    return %c0_i32, %c0_i32_0 : i32, i32
  }
  func.func @transform_5(%arg0: i32) -> (i32, i32) {
    %c0_i32 = arith.constant 0 : i32
    %c0_i32_0 = arith.constant 0 : i32
    %c0_i32_1 = arith.constant 0 : i32
    return %c0_i32, %c0_i32_0 : i32, i32
  }
  func.func @transform_6(%arg0: i32) -> (i32, i32) {
    %c0_i32 = arith.constant 0 : i32
    %c0_i32_0 = arith.constant 0 : i32
    %c0_i32_1 = arith.constant 0 : i32
    return %c0_i32, %c0_i32_0 : i32, i32
  }
  func.func @transform_7(%arg0: i32) -> (i32, i32) {
    %c0_i32 = arith.constant 0 : i32
    %c0_i32_0 = arith.constant 0 : i32
    %c0_i32_1 = arith.constant 0 : i32
    return %c0_i32, %c0_i32_0 : i32, i32
  }
  func.func @transform_8(%arg0: i32) -> (i32, i32) {
    %c0_i32 = arith.constant 0 : i32
    %c0_i32_0 = arith.constant 0 : i32
    return %arg0, %c0_i32 : i32, i32
  }
}

</mosaic_0001>

<llo_original>
// kernel: tpu_custom_call.1
$region0: #{tpu_custom_call.1}
  #allocation0 [shape = 'u32[]', space=smem, size = 0x4, offset = 0x4, fixed_abs, tag = 'smem constant byte address 0x4 - core index']
  #allocation1 [shape = 'u32[144,128]{1,0:T(1,128)}', space=vmem, size = 0x12000, scoped, tag = 'internal scratch']
  %s0 = inlined_call_operand.vmem [shape: f32[8,128], index: 0, kind: input, shape index: {}]
  %s1 = inlined_call_operand.vmem [shape: f32[8,128], index: 1, kind: input, shape index: {}]
  %s2 = inlined_call_operand.vmem [shape: f32[128,128], index: 2, kind: input, shape index: {}]
  %s3 = inlined_call_operand.hbm [shape: f32[128,128], index: 3, kind: input, shape index: {}]
  %s4 = inlined_call_operand.vmem [shape: f32[128,32], index: 4, kind: input, shape index: {}]
  %s5 = inlined_call_operand.vmem [shape: f32[1,128], index: 5, kind: input, shape index: {}]
  %s6 = inlined_call_operand.vmem [shape: f32[1,128], index: 6, kind: input, shape index: {}]
  %s7 = inlined_call_operand.vmem [shape: f32[1,32], index: 7, kind: input, shape index: {}]
  %s8 = inlined_call_operand.hbm [shape: f32[8,32], index: 8, kind: output, shape index: {}]
  %s9 = sld [smem:[#allocation0]]
  $region46: #{tpu_custom_call.1} parent=0
    _
  %s11 = ssub.s32 1, %s9
  %s12 = scalar_select 0, %s11, %s9
  $region1: #{tpu_custom_call.1} parent=0
    #allocation2 [shape = 'u8[65536]{0}', space=vmem, size = 0x10000, scoped, tag = 'input window, operand 3, single buffered']
    #allocation3 [shape = 's32[1]{0}', space=sflag, size = 0x4, scoped, tag = 'scoped memory for tpu_custom_call.1']
    #allocation4 [shape = 's32[1]{0}', space=sflag, size = 0x4, scoped, tag = 'scoped memory for tpu_custom_call.1']
    #allocation5 [shape = 'u8[4096]{0}', space=vmem, size = 0x1000, scoped, tag = 'output window, operand 0, single buffered']
    %13 = vsyncpa [#allocation3], 0
    %14 = vsyncpa [#allocation4], 0
    // Predicated region
    $region2: #{tpu_custom_call.1} parent=1 // pred_check
      _
    $region3: #{tpu_custom_call.1} parent=1 // pred_check_branch
      %16 = sbr.rel (0) target = $region5
    $region4: #{tpu_custom_call.1} parent=1 // pred_region
      _
    $region5: #{tpu_custom_call.1} parent=1 // pred_fallthru
      _
    // Predicated region
    $region6: #{tpu_custom_call.1} parent=1 // pred_check
      _
    $region7: #{tpu_custom_call.1} parent=1 // pred_check_branch
      %18 = sbr.rel (0) target = $region9
    $region8: #{tpu_custom_call.1} parent=1 // pred_region
      _
    $region9: #{tpu_custom_call.1} parent=1 // pred_fallthru
      _
    // Predicated region
    $region10: #{tpu_custom_call.1} parent=1 // pred_check
      _
    $region11: #{tpu_custom_call.1} parent=1 // pred_check_branch
      %20 = sbr.rel (0) target = $region13
    $region12: #{tpu_custom_call.1} parent=1 // pred_region
      _
    $region13: #{tpu_custom_call.1} parent=1 // pred_fallthru
      _
    // Predicated region
    $region14: #{tpu_custom_call.1} parent=1 // pred_check
      _
    $region15: #{tpu_custom_call.1} parent=1 // pred_check_branch
      %22 = sbr.rel (0) target = $region17
    $region16: #{tpu_custom_call.1} parent=1 // pred_region
      %s24 = ssub.s32 2048, 2048
      %25 = vsyncadd [#allocation3], %s24
      %s26 = sshll.u32 [#allocation2], 4
      %s27 = int_to_ptr.vmem [resolvable:$true] %s26
      %32 = dma.hbm_to_vmem [thread:$0]  %s3, 2048, %s27, [#allocation3], 128, 128, 8
    $region17: #{tpu_custom_call.1} parent=1 // pred_fallthru
      _
    // Predicated region
    $region18: #{tpu_custom_call.1} parent=1 // pred_check
      _
    $region19: #{tpu_custom_call.1} parent=1 // pred_check_branch
      %34 = sbr.rel (0) target = $region21
    $region20: #{tpu_custom_call.1} parent=1 // pred_region
      _
    $region21: #{tpu_custom_call.1} parent=1 // pred_fallthru
      _
    // Predicated region
    $region22: #{tpu_custom_call.1} parent=1 // pred_check
      _
    $region23: #{tpu_custom_call.1} parent=1 // pred_check_branch
      %36 = sbr.rel (0) target = $region25
    $region24: #{tpu_custom_call.1} parent=1 // pred_region
      _
    $region25: #{tpu_custom_call.1} parent=1 // pred_fallthru
      _
    // Predicated region
    $region26: #{tpu_custom_call.1} parent=1 // pred_check
      _
    $region27: #{tpu_custom_call.1} parent=1 // pred_check_branch
      %38 = sbr.rel (0) target = $region29
    $region28: #{tpu_custom_call.1} parent=1 // pred_region
      _
    $region29: #{tpu_custom_call.1} parent=1 // pred_fallthru
      _
    // Predicated region
    $region30: #{tpu_custom_call.1} parent=1 // pred_check
      _
    $region31: #{tpu_custom_call.1} parent=1 // pred_check_branch
      %40 = sbr.rel (0) target = $region33
    $region32: #{tpu_custom_call.1} parent=1 // pred_region
      _
    $region33: #{tpu_custom_call.1} parent=1 // pred_fallthru
      _
    // Predicated region
    $region34: #{tpu_custom_call.1} parent=1 // pred_check
      _
    $region35: #{tpu_custom_call.1} parent=1 // pred_check_branch
      %42 = sbr.rel (0) target = $region37
    $region36: #{tpu_custom_call.1} parent=1 // pred_region
      %43 = dma.done [#allocation3], 2048
    $region37: #{tpu_custom_call.1} parent=1 // pred_fallthru
      _
    %v44 = vld [vmem:[%s0] sm:$0xff]
    %v45 = vld [vmem:[%s1] sm:$0xff]
    %v46 = vld [vmem:[%s2] sm:$0xff]
    %v47 = vld [vmem:[%s2 + $0x8] sm:$0xff]
    %v48 = vld [vmem:[%s2 + $0x10] sm:$0xff]
    %v49 = vld [vmem:[%s2 + $0x18] sm:$0xff]
    %v50 = vld [vmem:[%s2 + $0x20] sm:$0xff]
    %v51 = vld [vmem:[%s2 + $0x28] sm:$0xff]
    %v52 = vld [vmem:[%s2 + $0x30] sm:$0xff]
    %v53 = vld [vmem:[%s2 + $0x38] sm:$0xff]
    %v54 = vld [vmem:[%s2 + $0x40] sm:$0xff]
    %v55 = vld [vmem:[%s2 + $0x48] sm:$0xff]
    %v56 = vld [vmem:[%s2 + $0x50] sm:$0xff]
    %v57 = vld [vmem:[%s2 + $0x58] sm:$0xff]
    %v58 = vld [vmem:[%s2 + $0x60] sm:$0xff]
    %v59 = vld [vmem:[%s2 + $0x68] sm:$0xff]
    %v60 = vld [vmem:[%s2 + $0x70] sm:$0xff]
    %v61 = vld [vmem:[%s2 + $0x78] sm:$0xff]
    %v62 = vld [vmem:[%s5] sm:$0x1]
    %v64 = vlaneseq
    %v65 = vshrl.u32 %v64, 7
    %v66 = vsub.s32 0, %v65
    %v67 = vrot.slane %v62, %v66
    %69 = vmatprep.subr.mxu0 0.0
    %70 = vmatpush1.msra.mxu0 %v46
    %71 = vmatprep.subr.mxu0 0.0
    %72 = vmatpush1.msra.mxu0 %v47
    %73 = vmatprep.subr.mxu0 0.0
    %74 = vmatpush1.msra.mxu0 %v48
    %75 = vmatprep.subr.mxu0 0.0
    %76 = vmatpush1.msra.mxu0 %v49
    %77 = vmatprep.subr.mxu0 0.0
    %78 = vmatpush1.msra.mxu0 %v50
    %79 = vmatprep.subr.mxu0 0.0
    %80 = vmatpush1.msra.mxu0 %v51
    %81 = vmatprep.subr.mxu0 0.0
    %82 = vmatpush1.msra.mxu0 %v52
    %83 = vmatprep.subr.mxu0 0.0
    %84 = vmatpush1.msra.mxu0 %v53
    %85 = vmatprep.subr.mxu0 0.0
    %86 = vmatpush1.msra.mxu0 %v54
    %87 = vmatprep.subr.mxu0 0.0
    %88 = vmatpush1.msra.mxu0 %v55
    %89 = vmatprep.subr.mxu0 0.0
    %90 = vmatpush1.msra.mxu0 %v56
    %91 = vmatprep.subr.mxu0 0.0
    %92 = vmatpush1.msra.mxu0 %v57
    %93 = vmatprep.subr.mxu0 0.0
    %94 = vmatpush1.msra.mxu0 %v58
    %95 = vmatprep.subr.mxu0 0.0
    %96 = vmatpush1.msra.mxu0 %v59
    %97 = vmatprep.subr.mxu0 0.0
    %98 = vmatpush1.msra.mxu0 %v60
    %99 = vmatprep.subr.mxu0 0.0
    %100 = vmatpush1.msra.mxu0 %v61
    %101 = vmatprep.subr.mxu0 0.0
    %102 = vmatpush1.msra.mxu0 0.0
    %103 = vmatprep.subr.mxu0 0.0
    %104 = vmatpush1.msra.mxu0 0.0
    %105 = vmatprep.subr.mxu0 0.0
    %106 = vmatpush1.msra.mxu0 0.0
    %107 = vmatprep.subr.mxu0 0.0
    %108 = vmatpush1.msra.mxu0 0.0
    %109 = vmatprep.subr.mxu0 0.0
    %110 = vmatpush1.msra.mxu0 0.0
    %111 = vmatprep.subr.mxu0 0.0
    %112 = vmatpush1.msra.mxu0 0.0
    %113 = vmatprep.subr.mxu0 0.0
    %114 = vmatpush1.msra.mxu0 0.0
    %115 = vmatprep.subr.mxu0 0.0
    %116 = vmatpush1.msra.mxu0 0.0
    %117 = vmatprep.subr.mxu0 0.0
    %118 = vmatpush1.msra.mxu0 0.0
    %119 = vmatprep.subr.mxu0 0.0
    %120 = vmatpush1.msra.mxu0 0.0
    %121 = vmatprep.subr.mxu0 0.0
    %122 = vmatpush1.msra.mxu0 0.0
    %123 = vmatprep.subr.mxu0 0.0
    %124 = vmatpush1.msra.mxu0 0.0
    %125 = vmatprep.subr.mxu0 0.0
    %126 = vmatpush1.msra.mxu0 0.0
    %127 = vmatprep.subr.mxu0 0.0
    %128 = vmatpush1.msra.mxu0 0.0
    %129 = vmatprep.subr.mxu0 0.0
    %130 = vmatpush1.msra.mxu0 0.0
    %131 = vmatprep.subr.mxu0 0.0
    %132 = vmatpush1.msra.mxu0 0.0
    %133 = vmatprep.mubr.f32.mxu0 0.0
    %134 = vmatmul.mubr.f32.gmra.mrb[0].mxu0 %v44
    %v135 = vpop.f32.mrb[0].mxu0
    %v136 = vadd.f32 %v67, %v135
    %v137 = vpop.f32.mrb[0].mxu0
    %138 = vdwg.mxu0
    %v139 = vld [vmem:[#allocation2] sm:$0xff]
    %v140 = vld [vmem:[#allocation2 + $0x8] sm:$0xff]
    %v141 = vld [vmem:[#allocation2 + $0x10] sm:$0xff]
    %v142 = vld [vmem:[#allocation2 + $0x18] sm:$0xff]
    %v143 = vld [vmem:[#allocation2 + $0x20] sm:$0xff]
    %v144 = vld [vmem:[#allocation2 + $0x28] sm:$0xff]
    %v145 = vld [vmem:[#allocation2 + $0x30] sm:$0xff]
    %v146 = vld [vmem:[#allocation2 + $0x38] sm:$0xff]
    %v147 = vld [vmem:[#allocation2 + $0x40] sm:$0xff]
    %v148 = vld [vmem:[#allocation2 + $0x48] sm:$0xff]
    %v149 = vld [vmem:[#allocation2 + $0x50] sm:$0xff]
    %v150 = vld [vmem:[#allocation2 + $0x58] sm:$0xff]
    %v151 = vld [vmem:[#allocation2 + $0x60] sm:$0xff]
    %v152 = vld [vmem:[#allocation2 + $0x68] sm:$0xff]
    %v153 = vld [vmem:[#allocation2 + $0x70] sm:$0xff]
    %v154 = vld [vmem:[#allocation2 + $0x78] sm:$0xff]
    %v155 = vld [vmem:[%s6] sm:$0x1]
    %v157 = vlaneseq
    %v158 = vshrl.u32 %v157, 7
    %v159 = vsub.s32 0, %v158
    %v160 = vrot.slane %v155, %v159
    %162 = vmatprep.subr.mxu0 0.0
    %163 = vmatpush1.msra.mxu0 %v139
    %164 = vmatprep.subr.mxu0 0.0
    %165 = vmatpush1.msra.mxu0 %v140
    %166 = vmatprep.subr.mxu0 0.0
    %167 = vmatpush1.msra.mxu0 %v141
    %168 = vmatprep.subr.mxu0 0.0
    %169 = vmatpush1.msra.mxu0 %v142
    %170 = vmatprep.subr.mxu0 0.0
    %171 = vmatpush1.msra.mxu0 %v143
    %172 = vmatprep.subr.mxu0 0.0
    %173 = vmatpush1.msra.mxu0 %v144
    %174 = vmatprep.subr.mxu0 0.0
    %175 = vmatpush1.msra.mxu0 %v145
    %176 = vmatprep.subr.mxu0 0.0
    %177 = vmatpush1.msra.mxu0 %v146
    %178 = vmatprep.subr.mxu0 0.0
    %179 = vmatpush1.msra.mxu0 %v147
    %180 = vmatprep.subr.mxu0 0.0
    %181 = vmatpush1.msra.mxu0 %v148
    %182 = vmatprep.subr.mxu0 0.0
    %183 = vmatpush1.msra.mxu0 %v149
    %184 = vmatprep.subr.mxu0 0.0
    %185 = vmatpush1.msra.mxu0 %v150
    %186 = vmatprep.subr.mxu0 0.0
    %187 = vmatpush1.msra.mxu0 %v151
    %188 = vmatprep.subr.mxu0 0.0
    %189 = vmatpush1.msra.mxu0 %v152
    %190 = vmatprep.subr.mxu0 0.0
    %191 = vmatpush1.msra.mxu0 %v153
    %192 = vmatprep.subr.mxu0 0.0
    %193 = vmatpush1.msra.mxu0 %v154
    %194 = vmatprep.subr.mxu0 0.0
    %195 = vmatpush1.msra.mxu0 0.0
    %196 = vmatprep.subr.mxu0 0.0
    %197 = vmatpush1.msra.mxu0 0.0
    %198 = vmatprep.subr.mxu0 0.0
    %199 = vmatpush1.msra.mxu0 0.0
    %200 = vmatprep.subr.mxu0 0.0
    %201 = vmatpush1.msra.mxu0 0.0
    %202 = vmatprep.subr.mxu0 0.0
    %203 = vmatpush1.msra.mxu0 0.0
    %204 = vmatprep.subr.mxu0 0.0
    %205 = vmatpush1.msra.mxu0 0.0
    %206 = vmatprep.subr.mxu0 0.0
    %207 = vmatpush1.msra.mxu0 0.0
    %208 = vmatprep.subr.mxu0 0.0
    %209 = vmatpush1.msra.mxu0 0.0
    %210 = vmatprep.subr.mxu0 0.0
    %211 = vmatpush1.msra.mxu0 0.0
    %212 = vmatprep.subr.mxu0 0.0
    %213 = vmatpush1.msra.mxu0 0.0
    %214 = vmatprep.subr.mxu0 0.0
    %215 = vmatpush1.msra.mxu0 0.0
    %216 = vmatprep.subr.mxu0 0.0
    %217 = vmatpush1.msra.mxu0 0.0
    %218 = vmatprep.subr.mxu0 0.0
    %219 = vmatpush1.msra.mxu0 0.0
    %220 = vmatprep.subr.mxu0 0.0
    %221 = vmatpush1.msra.mxu0 0.0
    %222 = vmatprep.subr.mxu0 0.0
    %223 = vmatpush1.msra.mxu0 0.0
    %224 = vmatprep.subr.mxu0 0.0
    %225 = vmatpush1.msra.mxu0 0.0
    %226 = vmatprep.mubr.f32.mxu0 0.0
    %227 = vmatmul.mubr.f32.gmra.mrb[0].mxu0 %v45
    %v228 = vpop.f32.mrb[0].mxu0
    %v229 = vadd.f32 %v160, %v228
    %v230 = vpop.f32.mrb[0].mxu0
    %231 = vdwg.mxu0
    %v232 = vmul.f32 %v136, %v229
    %v233 = vld [vmem:[%s4] sm:$0xff]
    %v234 = vld [vmem:[%s4 + $0x8] sm:$0xff]
    %v235 = vld [vmem:[%s4 + $0x10] sm:$0xff]
    %v236 = vld [vmem:[%s4 + $0x18] sm:$0xff]
    %v237 = vld [vmem:[%s4 + $0x20] sm:$0xff]
    %v238 = vld [vmem:[%s4 + $0x28] sm:$0xff]
    %v239 = vld [vmem:[%s4 + $0x30] sm:$0xff]
    %v240 = vld [vmem:[%s4 + $0x38] sm:$0xff]
    %v241 = vld [vmem:[%s4 + $0x40] sm:$0xff]
    %v242 = vld [vmem:[%s4 + $0x48] sm:$0xff]
    %v243 = vld [vmem:[%s4 + $0x50] sm:$0xff]
    %v244 = vld [vmem:[%s4 + $0x58] sm:$0xff]
    %v245 = vld [vmem:[%s4 + $0x60] sm:$0xff]
    %v246 = vld [vmem:[%s4 + $0x68] sm:$0xff]
    %v247 = vld [vmem:[%s4 + $0x70] sm:$0xff]
    %v248 = vld [vmem:[%s4 + $0x78] sm:$0xff]
    %v249 = vld [vmem:[%s7] sm:$0x1]
    %v251 = vlaneseq
    %v252 = vshrl.u32 %v251, 7
    %v253 = vsub.s32 0, %v252
    %v254 = vrot.slane %v249, %v253
    %256 = vmatprep.subr.mxu0 0.0
    %257 = vmatpush1.msra.mxu0 %v233
    %258 = vmatprep.subr.mxu0 0.0
    %259 = vmatpush1.msra.mxu0 %v234
    %260 = vmatprep.subr.mxu0 0.0
    %261 = vmatpush1.msra.mxu0 %v235
    %262 = vmatprep.subr.mxu0 0.0
    %263 = vmatpush1.msra.mxu0 %v236
    %264 = vmatprep.subr.mxu0 0.0
    %265 = vmatpush1.msra.mxu0 %v237
    %266 = vmatprep.subr.mxu0 0.0
    %267 = vmatpush1.msra.mxu0 %v238
    %268 = vmatprep.subr.mxu0 0.0
    %269 = vmatpush1.msra.mxu0 %v239
    %270 = vmatprep.subr.mxu0 0.0
    %271 = vmatpush1.msra.mxu0 %v240
    %272 = vmatprep.subr.mxu0 0.0
    %273 = vmatpush1.msra.mxu0 %v241
    %274 = vmatprep.subr.mxu0 0.0
    %275 = vmatpush1.msra.mxu0 %v242
    %276 = vmatprep.subr.mxu0 0.0
    %277 = vmatpush1.msra.mxu0 %v243
    %278 = vmatprep.subr.mxu0 0.0
    %279 = vmatpush1.msra.mxu0 %v244
    %280 = vmatprep.subr.mxu0 0.0
    %281 = vmatpush1.msra.mxu0 %v245
    %282 = vmatprep.subr.mxu0 0.0
    %283 = vmatpush1.msra.mxu0 %v246
    %284 = vmatprep.subr.mxu0 0.0
    %285 = vmatpush1.msra.mxu0 %v247
    %286 = vmatprep.subr.mxu0 0.0
    %287 = vmatpush1.msra.mxu0 %v248
    %288 = vmatprep.subr.mxu0 0.0
    %289 = vmatpush1.msra.mxu0 0.0
    %290 = vmatprep.subr.mxu0 0.0
    %291 = vmatpush1.msra.mxu0 0.0
    %292 = vmatprep.subr.mxu0 0.0
    %293 = vmatpush1.msra.mxu0 0.0
    %294 = vmatprep.subr.mxu0 0.0
    %295 = vmatpush1.msra.mxu0 0.0
    %296 = vmatprep.subr.mxu0 0.0
    %297 = vmatpush1.msra.mxu0 0.0
    %298 = vmatprep.subr.mxu0 0.0
    %299 = vmatpush1.msra.mxu0 0.0
    %300 = vmatprep.subr.mxu0 0.0
    %301 = vmatpush1.msra.mxu0 0.0
    %302 = vmatprep.subr.mxu0 0.0
    %303 = vmatpush1.msra.mxu0 0.0
    %304 = vmatprep.subr.mxu0 0.0
    %305 = vmatpush1.msra.mxu0 0.0
    %306 = vmatprep.subr.mxu0 0.0
    %307 = vmatpush1.msra.mxu0 0.0
    %308 = vmatprep.subr.mxu0 0.0
    %309 = vmatpush1.msra.mxu0 0.0
    %310 = vmatprep.subr.mxu0 0.0
    %311 = vmatpush1.msra.mxu0 0.0
    %312 = vmatprep.subr.mxu0 0.0
    %313 = vmatpush1.msra.mxu0 0.0
    %314 = vmatprep.subr.mxu0 0.0
    %315 = vmatpush1.msra.mxu0 0.0
    %316 = vmatprep.subr.mxu0 0.0
    %317 = vmatpush1.msra.mxu0 0.0
    %318 = vmatprep.subr.mxu0 0.0
    %319 = vmatpush1.msra.mxu0 0.0
    %320 = vmatprep.mubr.f32.mxu0 0.0
    %321 = vmatmul.mubr.f32.gmra.mrb[0].mxu0 %v232
    %v322 = vpop.f32.mrb[0].mxu0
    %v323 = vadd.f32 %v254, %v322
    %v324 = vpop.f32.mrb[0].mxu0
    %325 = vdwg.mxu0
    %v326 = vxor.u32 %v323, 2147483648
    %v327 = vmul.f32 %v326, 1.442695
    %v328 = vpow.pop %v327
    %v329 = vadd.f32 %v328, 1.0
    %v330 = vrcp.pop %v329
    %v331 = vmul.f32 1.0, %v330
    %vm332 = vcmask 261120
    %333 = vst.msk [vmem:[#allocation5] sm:$0xff] %vm332, %v331
    // Predicated region
    $region38: #{tpu_custom_call.1} parent=1 // pred_check
      _
    $region39: #{tpu_custom_call.1} parent=1 // pred_check_branch
      %335 = sbr.rel (0) target = $region41
    $region40: #{tpu_custom_call.1} parent=1 // pred_region
      %s337 = ssub.s32 128, 128
      %338 = vsyncadd [#allocation4], %s337
      %s340 = sshll.u32 [#allocation5], 4
      %s341 = int_to_ptr.vmem [resolvable:$true] %s340
      %343 = dma.vmem_to_hbm [thread:$0]  %s341, 128, %s8, [#allocation4]
    $region41: #{tpu_custom_call.1} parent=1 // pred_fallthru
      _
    // Predicated region
    $region42: #{tpu_custom_call.1} parent=1 // pred_check
      _
    $region43: #{tpu_custom_call.1} parent=1 // pred_check_branch
      %345 = sbr.rel (0) target = $region45
    $region44: #{tpu_custom_call.1} parent=1 // pred_region
      %346 = dma.done [#allocation4], 128
    $region45: #{tpu_custom_call.1} parent=1 // pred_fallthru
      _
    %347 = vsyncpa [#allocation3], 1
    %348 = vsyncpa [#allocation4], 1

</llo_original>
